<compile_context>
chip_gen: v6e
topology: v6e:2x2x1
jax: 0.10.0
libtpu: 0.0.40
codegen_flags: <defaults>
</compile_context>

<pallas_src>
import jax
import jax.numpy as jnp
from jax.experimental import pallas as pl
from jax.experimental.pallas import tpu as pltpu


# ------------------------------ fused StemBlock kernel ------------------------------


def _make_stem_kernel(Hq, Wq):
    """Fused kernel for one batch element.

    Per-batch inputs (all f32):
      p_ref : (4*Hq*Wq, 9*Cin)  conv1 im2col patches, rows grouped by output-parity
                                plane (py,px) in order (0,0),(0,1),(1,0),(1,1),
                                each plane row-major over its (Hq, Wq) grid.
      w1/b1 : (9*Cin, 32) / (1, 32)    conv1   3x3 stride-2 pad-1
      wa/ba : (32, 16)    / (1, 16)    path1   1x1
      wb/bb : (9*16, 32)  / (1, 32)    path1   3x3 stride-2 pad-1
      wf/bf : (64, Cout)  / (1, Cout)  final   1x1
    Output:
      o_ref : (Hq*Wq, Cout)
    """
    So = Hq * Wq

    def kernel(p_ref, w1_ref, b1_ref, wa_ref, ba_ref, wb_ref, bb_ref,
               wf_ref, bf_ref, o_ref):
        f32 = jnp.float32

        # conv1: single MXU matmul over pre-built patches -> x1 in parity-plane form.
        x1 = jnp.dot(p_ref[...], w1_ref[...], preferred_element_type=f32) + b1_ref[...]
        x_planes = [x1[i * So:(i + 1) * So, :] for i in range(4)]   # idx = py*2 + px

        # path2: MaxPool2d(2, 2) == elementwise max over the four parity planes.
        p2 = jnp.maximum(jnp.maximum(x_planes[0], x_planes[1]),
                         jnp.maximum(x_planes[2], x_planes[3]))      # (So, 32)

        # path1, 1x1 conv (32 -> 16) on all four planes with a single matmul.
        t1 = jnp.dot(x1, wa_ref[...], preferred_element_type=f32) + ba_ref[...]
        t_planes = [t1[i * So:(i + 1) * So, :] for i in range(4)]
        cmid = t_planes[0].shape[1]

        # path1, 3x3 stride-2 pad-1 conv (16 -> 32): each tap (ky,kx) reads one parity
        # plane of t1 shifted by {-1, 0} rows/cols (zero fill == the padding).
        # Build the im2col matrix in registers, one matmul.
        row_ids = jax.lax.broadcasted_iota(jnp.int32, (So, cmid), 0)
        left_edge = (row_ids % Wq) == 0        # output rows whose source column is pad
        cols = []
        for ky in range(3):
            for kx in range(3):
                pidx = ((ky - 1) % 2) * 2 + ((kx - 1) % 2)
                shift = (Wq if ky == 0 else 0) + (1 if kx == 0 else 0)
                win = t_planes[pidx]
                if shift:
                    win = jnp.concatenate(
                        [jnp.zeros((shift, cmid), f32), win[:So - shift, :]], axis=0)
                if kx == 0:
                    win = jnp.where(left_edge, 0.0, win)
                cols.append(win)
        im2col = jnp.concatenate(cols, axis=1)                       # (So, 9*cmid)
        p1 = jnp.dot(im2col, wb_ref[...], preferred_element_type=f32) + bb_ref[...]

        # torch.cat([p1, p2], dim=1) then final 1x1 conv (64 -> Cout).
        cat = jnp.concatenate([p1, p2], axis=1)                      # (So, 64)
        out = jnp.dot(cat, wf_ref[...], preferred_element_type=f32) + bf_ref[...]
        o_ref[...] = out.astype(o_ref.dtype)

    return kernel


# ------------------------------ wrapper --------------------------------------------


def _conv1_patches(x_nhwc):
    """im2col for the stride-2 3x3 conv1; rows grouped by output-parity plane."""
    N, H, W, Cin = x_nhwc.shape
    assert H % 4 == 0 and W % 4 == 0, "demo wrapper assumes H, W divisible by 4"
    Hq, Wq = H // 4, W // 4
    xpad = jnp.pad(x_nhwc, ((0, 0), (1, 1), (1, 1), (0, 0)))
    blocks = []
    for py in range(2):
        for px in range(2):
            taps = []
            for ky in range(3):
                for kx in range(3):
                    rs = 2 * py + ky
                    cs = 2 * px + kx
                    taps.append(xpad[:, rs:rs + 4 * (Hq - 1) + 1:4,
                                        cs:cs + 4 * (Wq - 1) + 1:4, :])
            blk = jnp.concatenate(taps, axis=-1)             # (N, Hq, Wq, 9*Cin)
            blocks.append(blk.reshape(N, Hq * Wq, 9 * Cin))
    return jnp.concatenate(blocks, axis=1)                   # (N, 4*Hq*Wq, 9*Cin)


def stem_block_forward(x_nchw, params):
    N, Cin, H, W = x_nchw.shape
    x = jnp.transpose(x_nchw, (0, 2, 3, 1))                  # NCHW -> NHWC
    patches = _conv1_patches(x)                              # (N, 4*Hq*Wq, 9*Cin)
    Hq, Wq = H // 4, W // 4
    So = Hq * Wq

    w1, b1 = params["conv1"]
    wa, ba = params["p1a"]
    wb, bb = params["p1b"]
    wf, bf = params["final"]
    c1, cmid, c1b, cout = w1.shape[1], wa.shape[1], wb.shape[1], wf.shape[1]
    K1, Kb, Kf = w1.shape[0], wb.shape[0], wf.shape[0]

    out = pl.pallas_call(
        _make_stem_kernel(Hq, Wq),
        out_shape=jax.ShapeDtypeStruct((N, So, cout), x.dtype),
        grid=(N,),
        in_specs=[
            pl.BlockSpec((pl.Squeezed(), 4 * So, K1), lambda n: (n, 0, 0)),
            pl.BlockSpec((K1, c1), lambda n: (0, 0)),
            pl.BlockSpec((1, c1), lambda n: (0, 0)),
            pl.BlockSpec((c1, cmid), lambda n: (0, 0)),
            pl.BlockSpec((1, cmid), lambda n: (0, 0)),
            pl.BlockSpec((Kb, c1b), lambda n: (0, 0)),
            pl.BlockSpec((1, c1b), lambda n: (0, 0)),
            pl.BlockSpec((Kf, cout), lambda n: (0, 0)),
            pl.BlockSpec((1, cout), lambda n: (0, 0)),
        ],
        out_specs=pl.BlockSpec((pl.Squeezed(), So, cout), lambda n: (n, 0, 0)),
        compiler_params=pltpu.CompilerParams(dimension_semantics=("parallel",)),
    )(patches, w1, b1.reshape(1, -1), wa, ba.reshape(1, -1),
      wb, bb.reshape(1, -1), wf, bf.reshape(1, -1))

    out = out.reshape(N, Hq, Wq, cout)
    return jnp.transpose(out, (0, 3, 1, 2))                  # NHWC -> NCHW


# ------------------------------ params (PyTorch-style init) -------------------------


def _conv_param(key, cout, cin, kh, kw):
    kw_, kb_ = jax.random.split(key)
    fan_in = cin * kh * kw
    bound = fan_in ** -0.5
    # PyTorch Conv2d weight layout (Cout, Cin, KH, KW) -> matmul layout (KH*KW*Cin, Cout).
    w_torch = jax.random.uniform(kw_, (cout, cin, kh, kw), jnp.float32, -bound, bound)
    b = jax.random.uniform(kb_, (cout,), jnp.float32, -bound, bound)
    w_mat = jnp.transpose(w_torch, (2, 3, 1, 0)).reshape(kh * kw * cin, cout)
    return w_mat, b


def init_stem_block(key, in_channels=1, out_channels=32):
    ks = jax.random.split(key, 4)
    return {
        "conv1": _conv_param(ks[0], 32, in_channels, 3, 3),
        "p1a":   _conv_param(ks[1], 16, 32, 1, 1),
        "p1b":   _conv_param(ks[2], 32, 16, 3, 3),
        "final": _conv_param(ks[3], out_channels, 64, 1, 1),
    }


# ------------------------------ pure-JAX reference ----------------------------------


def _conv_ref(x_nhwc, w_mat, b, kh, kw, stride, pad):
    cin = w_mat.shape[0] // (kh * kw)
    w_hwio = w_mat.reshape(kh, kw, cin, -1)
    y = jax.lax.conv_general_dilated(
        x_nhwc, w_hwio, window_strides=(stride, stride),
        padding=((pad, pad), (pad, pad)),
        dimension_numbers=("NHWC", "HWIO", "NHWC"))
    return y + b


def stem_block_ref(x_nchw, params):
    x = jnp.transpose(x_nchw, (0, 2, 3, 1))
    x1 = _conv_ref(x, *params["conv1"], kh=3, kw=3, stride=2, pad=1)
    t = _conv_ref(x1, *params["p1a"], kh=1, kw=1, stride=1, pad=0)
    p1 = _conv_ref(t, *params["p1b"], kh=3, kw=3, stride=2, pad=1)
    p2 = jax.lax.reduce_window(x1, -jnp.inf, jax.lax.max,
                               (1, 2, 2, 1), (1, 2, 2, 1), "VALID")
    cat = jnp.concatenate([p1, p2], axis=-1)
    y = _conv_ref(cat, *params["final"], kh=1, kw=1, stride=1, pad=0)
    return jnp.transpose(y, (0, 3, 1, 2))


# ------------------------------ demo -------------------------------------------------


if __name__ == "__main__":
    key = jax.random.PRNGKey(0)
    kx, kp = jax.random.split(key)

    N, Cin, H, W = 2, 1, 16, 16                  # matches StemBlock(in_channels=1)
    x = jax.random.normal(kx, (N, Cin, H, W), jnp.float32)
    params = init_stem_block(kp, in_channels=Cin, out_channels=32)

    fwd = jax.jit(stem_block_forward)
    y = fwd(x, params)
    jax.block_until_ready(y)

    y_ref = stem_block_ref(x, params)
    assert y.shape == (N, 32, H // 4, W // 4), y.shape
    err = float(jnp.max(jnp.abs(y - y_ref)))
    assert err < 1e-3, f"mismatch vs reference: {err}"

    print("KERNEL_OK")
</pallas_src>

<mosaic_0001>
module attributes {stable_mosaic.version = 11 : i64} {
  func.func @kernel(%arg0: i32, %arg1: memref<1x64x9xf32, #tpu.memory_space<vmem>>, %arg2: memref<9x32xf32, #tpu.memory_space<vmem>>, %arg3: memref<1x32xf32, #tpu.memory_space<vmem>>, %arg4: memref<32x16xf32, #tpu.memory_space<vmem>>, %arg5: memref<1x16xf32, #tpu.memory_space<vmem>>, %arg6: memref<144x32xf32, #tpu.memory_space<vmem>>, %arg7: memref<1x32xf32, #tpu.memory_space<vmem>>, %arg8: memref<64x32xf32, #tpu.memory_space<vmem>>, %arg9: memref<1x32xf32, #tpu.memory_space<vmem>>, %arg10: memref<1x16x32xf32, #tpu.memory_space<vmem>>) attributes {dimension_semantics = [#tpu.dimension_semantics<parallel>], iteration_bounds = array<i64: 2>, scalar_prefetch = 0 : i64, scratch_operands = 0 : i64, tpu.core_type = #tpu.core_type<tc>, window_params = [{transform_indices = @transform_0, window_bounds = array<i64: 1, 64, 9>}, {pipeline_mode = #tpu.pipeline_mode<synchronous>, transform_indices = @transform_1, window_bounds = array<i64: 9, 32>}, {pipeline_mode = #tpu.pipeline_mode<synchronous>, transform_indices = @transform_2, window_bounds = array<i64: 1, 32>}, {pipeline_mode = #tpu.pipeline_mode<synchronous>, transform_indices = @transform_3, window_bounds = array<i64: 32, 16>}, {pipeline_mode = #tpu.pipeline_mode<synchronous>, transform_indices = @transform_4, window_bounds = array<i64: 1, 16>}, {pipeline_mode = #tpu.pipeline_mode<synchronous>, transform_indices = @transform_5, window_bounds = array<i64: 144, 32>}, {pipeline_mode = #tpu.pipeline_mode<synchronous>, transform_indices = @transform_6, window_bounds = array<i64: 1, 32>}, {pipeline_mode = #tpu.pipeline_mode<synchronous>, transform_indices = @transform_7, window_bounds = array<i64: 64, 32>}, {pipeline_mode = #tpu.pipeline_mode<synchronous>, transform_indices = @transform_8, window_bounds = array<i64: 1, 32>}, {transform_indices = @transform_9, window_bounds = array<i64: 1, 16, 32>}]} {
    %c0 = arith.constant 0 : index
    %c0_0 = arith.constant 0 : index
    %c0_1 = arith.constant 0 : index
    %0 = vector.load %arg1[%c0, %c0_0, %c0_1] : memref<1x64x9xf32, #tpu.memory_space<vmem>>, vector<1x64x9xf32>
    %1 = vector.shape_cast %0 : vector<1x64x9xf32> to vector<64x9xf32>
    %c0_2 = arith.constant 0 : index
    %c0_3 = arith.constant 0 : index
    %2 = vector.load %arg2[%c0_2, %c0_3] : memref<9x32xf32, #tpu.memory_space<vmem>>, vector<9x32xf32>
    %cst = arith.constant dense<0.000000e+00> : vector<64x32xf32>
    %3 = tpu.matmul %1, %2, %cst {dimension_numbers = #tpu.dot_dimension_numbers<[1], [0], [0], [1], [0, 0, 1, 1], [], []>} : vector<64x9xf32>, vector<9x32xf32>, vector<64x32xf32> -> vector<64x32xf32>
    %c0_4 = arith.constant 0 : index
    %c0_5 = arith.constant 0 : index
    %4 = vector.load %arg3[%c0_4, %c0_5] : memref<1x32xf32, #tpu.memory_space<vmem>>, vector<1x32xf32>
    %5 = vector.broadcast %4 : vector<1x32xf32> to vector<64x32xf32>
    %6 = arith.addf %3, %5 : vector<64x32xf32>
    %7 = vector.extract_strided_slice %6 {offsets = [0, 0], sizes = [16, 32], strides = [1, 1]} : vector<64x32xf32> to vector<16x32xf32>
    %8 = vector.extract_strided_slice %6 {offsets = [16, 0], sizes = [16, 32], strides = [1, 1]} : vector<64x32xf32> to vector<16x32xf32>
    %9 = vector.extract_strided_slice %6 {offsets = [32, 0], sizes = [16, 32], strides = [1, 1]} : vector<64x32xf32> to vector<16x32xf32>
    %10 = vector.extract_strided_slice %6 {offsets = [48, 0], sizes = [16, 32], strides = [1, 1]} : vector<64x32xf32> to vector<16x32xf32>
    %11 = arith.maximumf %7, %8 : vector<16x32xf32>
    %12 = arith.maximumf %9, %10 : vector<16x32xf32>
    %13 = arith.maximumf %11, %12 : vector<16x32xf32>
    %c0_6 = arith.constant 0 : index
    %c0_7 = arith.constant 0 : index
    %14 = vector.load %arg4[%c0_6, %c0_7] : memref<32x16xf32, #tpu.memory_space<vmem>>, vector<32x16xf32>
    %cst_8 = arith.constant dense<0.000000e+00> : vector<64x16xf32>
    %15 = tpu.matmul %6, %14, %cst_8 {dimension_numbers = #tpu.dot_dimension_numbers<[1], [0], [0], [1], [0, 0, 1, 1], [], []>} : vector<64x32xf32>, vector<32x16xf32>, vector<64x16xf32> -> vector<64x16xf32>
    %c0_9 = arith.constant 0 : index
    %c0_10 = arith.constant 0 : index
    %16 = vector.load %arg5[%c0_9, %c0_10] : memref<1x16xf32, #tpu.memory_space<vmem>>, vector<1x16xf32>
    %17 = vector.broadcast %16 : vector<1x16xf32> to vector<64x16xf32>
    %18 = arith.addf %15, %17 : vector<64x16xf32>
    %19 = vector.extract_strided_slice %18 {offsets = [0, 0], sizes = [16, 16], strides = [1, 1]} : vector<64x16xf32> to vector<16x16xf32>
    %20 = vector.extract_strided_slice %18 {offsets = [16, 0], sizes = [16, 16], strides = [1, 1]} : vector<64x16xf32> to vector<16x16xf32>
    %21 = vector.extract_strided_slice %18 {offsets = [32, 0], sizes = [16, 16], strides = [1, 1]} : vector<64x16xf32> to vector<16x16xf32>
    %22 = vector.extract_strided_slice %18 {offsets = [48, 0], sizes = [16, 16], strides = [1, 1]} : vector<64x16xf32> to vector<16x16xf32>
    %23 = tpu.iota {dimensions = array<i32: 0>} : vector<16x16xi32>
    %c4_i32 = arith.constant 4 : i32
    %c0_i32 = arith.constant 0 : i32
    %24 = arith.cmpi eq, %c4_i32, %c0_i32 : i32
    %c1_i32 = arith.constant 1 : i32
    %25 = arith.select %24, %c1_i32, %c4_i32 : i32
    %26 = vector.broadcast %25 : i32 to vector<16x16xi32>
    %27 = arith.remsi %23, %26 : vector<16x16xi32>
    %c0_i32_11 = arith.constant 0 : i32
    %28 = vector.broadcast %c0_i32_11 : i32 to vector<16x16xi32>
    %29 = arith.cmpi ne, %27, %28 : vector<16x16xi32>
    %c0_i32_12 = arith.constant 0 : i32
    %30 = vector.broadcast %c0_i32_12 : i32 to vector<16x16xi32>
    %31 = arith.cmpi slt, %27, %30 : vector<16x16xi32>
    %c0_i32_13 = arith.constant 0 : i32
    %32 = arith.cmpi slt, %25, %c0_i32_13 : i32
    %33 = vector.broadcast %32 : i1 to vector<16x16xi1>
    %34 = vector.broadcast %33 : vector<16x16xi1> to vector<16x16xi1>
    %35 = arith.xori %31, %34 : vector<16x16xi1>
    %36 = arith.andi %35, %29 : vector<16x16xi1>
    %37 = vector.broadcast %25 : i32 to vector<16x16xi32>
    %38 = arith.addi %27, %37 : vector<16x16xi32>
    %39 = arith.select %36, %38, %27 : vector<16x16xi1>, vector<16x16xi32>
    %c0_i32_14 = arith.constant 0 : i32
    %40 = vector.broadcast %c0_i32_14 : i32 to vector<16x16xi32>
    %41 = arith.cmpi eq, %39, %40 : vector<16x16xi32>
    %cst_15 = arith.constant 0.000000e+00 : f32
    %42 = vector.broadcast %cst_15 : f32 to vector<5x16xf32>
    %43 = vector.extract_strided_slice %22 {offsets = [0, 0], sizes = [11, 16], strides = [1, 1]} : vector<16x16xf32> to vector<11x16xf32>
    %44 = tpu.concatenate %42, %43 in 0 : vector<5x16xf32>, vector<11x16xf32> -> vector<16x16xf32>
    %cst_16 = arith.constant 0.000000e+00 : f32
    %45 = vector.broadcast %cst_16 : f32 to vector<16x16xf32>
    %46 = arith.select %41, %45, %44 : vector<16x16xi1>, vector<16x16xf32>
    %cst_17 = arith.constant 0.000000e+00 : f32
    %47 = vector.broadcast %cst_17 : f32 to vector<4x16xf32>
    %48 = vector.extract_strided_slice %21 {offsets = [0, 0], sizes = [12, 16], strides = [1, 1]} : vector<16x16xf32> to vector<12x16xf32>
    %49 = tpu.concatenate %47, %48 in 0 : vector<4x16xf32>, vector<12x16xf32> -> vector<16x16xf32>
    %cst_18 = arith.constant 0.000000e+00 : f32
    %50 = vector.broadcast %cst_18 : f32 to vector<4x16xf32>
    %51 = vector.extract_strided_slice %22 {offsets = [0, 0], sizes = [12, 16], strides = [1, 1]} : vector<16x16xf32> to vector<12x16xf32>
    %52 = tpu.concatenate %50, %51 in 0 : vector<4x16xf32>, vector<12x16xf32> -> vector<16x16xf32>
    %cst_19 = arith.constant 0.000000e+00 : f32
    %53 = vector.broadcast %cst_19 : f32 to vector<1x16xf32>
    %54 = vector.extract_strided_slice %20 {offsets = [0, 0], sizes = [15, 16], strides = [1, 1]} : vector<16x16xf32> to vector<15x16xf32>
    %55 = tpu.concatenate %53, %54 in 0 : vector<1x16xf32>, vector<15x16xf32> -> vector<16x16xf32>
    %cst_20 = arith.constant 0.000000e+00 : f32
    %56 = vector.broadcast %cst_20 : f32 to vector<16x16xf32>
    %57 = arith.select %41, %56, %55 : vector<16x16xi1>, vector<16x16xf32>
    %cst_21 = arith.constant 0.000000e+00 : f32
    %58 = vector.broadcast %cst_21 : f32 to vector<1x16xf32>
    %59 = vector.extract_strided_slice %22 {offsets = [0, 0], sizes = [15, 16], strides = [1, 1]} : vector<16x16xf32> to vector<15x16xf32>
    %60 = tpu.concatenate %58, %59 in 0 : vector<1x16xf32>, vector<15x16xf32> -> vector<16x16xf32>
    %cst_22 = arith.constant 0.000000e+00 : f32
    %61 = vector.broadcast %cst_22 : f32 to vector<16x16xf32>
    %62 = arith.select %41, %61, %60 : vector<16x16xi1>, vector<16x16xf32>
    %63 = tpu.concatenate %46, %49, %52, %57, %19, %20, %62, %21, %22 in 1 : vector<16x16xf32>, vector<16x16xf32>, vector<16x16xf32>, vector<16x16xf32>, vector<16x16xf32>, vector<16x16xf32>, vector<16x16xf32>, vector<16x16xf32>, vector<16x16xf32> -> vector<16x144xf32>
    %c0_23 = arith.constant 0 : index
    %c0_24 = arith.constant 0 : index
    %64 = vector.load %arg6[%c0_23, %c0_24] : memref<144x32xf32, #tpu.memory_space<vmem>>, vector<144x32xf32>
    %cst_25 = arith.constant dense<0.000000e+00> : vector<16x32xf32>
    %65 = tpu.matmul %63, %64, %cst_25 {dimension_numbers = #tpu.dot_dimension_numbers<[1], [0], [0], [1], [0, 0, 1, 1], [], []>} : vector<16x144xf32>, vector<144x32xf32>, vector<16x32xf32> -> vector<16x32xf32>
    %c0_26 = arith.constant 0 : index
    %c0_27 = arith.constant 0 : index
    %66 = vector.load %arg7[%c0_26, %c0_27] : memref<1x32xf32, #tpu.memory_space<vmem>>, vector<1x32xf32>
    %67 = vector.broadcast %66 : vector<1x32xf32> to vector<16x32xf32>
    %68 = arith.addf %65, %67 : vector<16x32xf32>
    %69 = tpu.concatenate %68, %13 in 1 : vector<16x32xf32>, vector<16x32xf32> -> vector<16x64xf32>
    %c0_28 = arith.constant 0 : index
    %c0_29 = arith.constant 0 : index
    %70 = vector.load %arg8[%c0_28, %c0_29] : memref<64x32xf32, #tpu.memory_space<vmem>>, vector<64x32xf32>
    %cst_30 = arith.constant dense<0.000000e+00> : vector<16x32xf32>
    %71 = tpu.matmul %69, %70, %cst_30 {dimension_numbers = #tpu.dot_dimension_numbers<[1], [0], [0], [1], [0, 0, 1, 1], [], []>} : vector<16x64xf32>, vector<64x32xf32>, vector<16x32xf32> -> vector<16x32xf32>
    %c0_31 = arith.constant 0 : index
    %c0_32 = arith.constant 0 : index
    %72 = vector.load %arg9[%c0_31, %c0_32] : memref<1x32xf32, #tpu.memory_space<vmem>>, vector<1x32xf32>
    %73 = vector.broadcast %72 : vector<1x32xf32> to vector<16x32xf32>
    %74 = arith.addf %71, %73 : vector<16x32xf32>
    %c0_33 = arith.constant 0 : index
    %c0_34 = arith.constant 0 : index
    %c0_35 = arith.constant 0 : index
    %75 = vector.load %arg10[%c0_33, %c0_34, %c0_35] : memref<1x16x32xf32, #tpu.memory_space<vmem>>, vector<1x16x32xf32>
    %76 = vector.shape_cast %75 : vector<1x16x32xf32> to vector<16x32xf32>
    %77 = vector.shape_cast %74 : vector<16x32xf32> to vector<1x16x32xf32>
    tpu.vector_store %arg10[%c0_33, %c0_34, %c0_35], %77 {strides = array<i32>} : memref<1x16x32xf32, #tpu.memory_space<vmem>>, vector<1x16x32xf32>,
    return
  }
  func.func @transform_0(%arg0: i32) -> (i32, i32, i32) {
    %c0_i32 = arith.constant 0 : i32
    %c0_i32_0 = arith.constant 0 : i32
    %c0_i32_1 = arith.constant 0 : i32
    return %arg0, %c0_i32, %c0_i32_0 : i32, i32, i32
  }
  func.func @transform_1(%arg0: i32) -> (i32, i32) {
    %c0_i32 = arith.constant 0 : i32
    %c0_i32_0 = arith.constant 0 : i32
    %c0_i32_1 = arith.constant 0 : i32
    return %c0_i32, %c0_i32_0 : i32, i32
  }
  func.func @transform_2(%arg0: i32) -> (i32, i32) {
    %c0_i32 = arith.constant 0 : i32
    %c0_i32_0 = arith.constant 0 : i32
    %c0_i32_1 = arith.constant 0 : i32
    return %c0_i32, %c0_i32_0 : i32, i32
  }
  func.func @transform_3(%arg0: i32) -> (i32, i32) {
    %c0_i32 = arith.constant 0 : i32
    %c0_i32_0 = arith.constant 0 : i32
    %c0_i32_1 = arith.constant 0 : i32
    return %c0_i32, %c0_i32_0 : i32, i32
  }
  func.func @transform_4(%arg0: i32) -> (i32, i32) {
    %c0_i32 = arith.constant 0 : i32
    %c0_i32_0 = arith.constant 0 : i32
    %c0_i32_1 = arith.constant 0 : i32
    return %c0_i32, %c0_i32_0 : i32, i32
  }
  func.func @transform_5(%arg0: i32) -> (i32, i32) {
    %c0_i32 = arith.constant 0 : i32
    %c0_i32_0 = arith.constant 0 : i32
    %c0_i32_1 = arith.constant 0 : i32
    return %c0_i32, %c0_i32_0 : i32, i32
  }
  func.func @transform_6(%arg0: i32) -> (i32, i32) {
    %c0_i32 = arith.constant 0 : i32
    %c0_i32_0 = arith.constant 0 : i32
    %c0_i32_1 = arith.constant 0 : i32
    return %c0_i32, %c0_i32_0 : i32, i32
  }
  func.func @transform_7(%arg0: i32) -> (i32, i32) {
    %c0_i32 = arith.constant 0 : i32
    %c0_i32_0 = arith.constant 0 : i32
    %c0_i32_1 = arith.constant 0 : i32
    return %c0_i32, %c0_i32_0 : i32, i32
  }
  func.func @transform_8(%arg0: i32) -> (i32, i32) {
    %c0_i32 = arith.constant 0 : i32
    %c0_i32_0 = arith.constant 0 : i32
    %c0_i32_1 = arith.constant 0 : i32
    return %c0_i32, %c0_i32_0 : i32, i32
  }
  func.func @transform_9(%arg0: i32) -> (i32, i32, i32) {
    %c0_i32 = arith.constant 0 : i32
    %c0_i32_0 = arith.constant 0 : i32
    %c0_i32_1 = arith.constant 0 : i32
    return %arg0, %c0_i32, %c0_i32_0 : i32, i32, i32
  }
}

</mosaic_0001>

<llo_original>
// kernel: stem_block_forward.1
$region0: #{stem_block_forward.1}
  #allocation0 [shape = 'u32[]', space=smem, size = 0x4, offset = 0x4, fixed_abs, tag = 'smem constant byte address 0x4 - core index']
  #allocation1 [shape = 'u32[144,128]{1,0:T(1,128)}', space=vmem, size = 0x12000, scoped, tag = 'internal scratch']
  %s0 = inlined_call_operand.vmem [shape: f32[2,64,9], index: 0, kind: input, shape index: {}]
  %s1 = inlined_call_operand.vmem [shape: f32[9,32], index: 1, kind: input, shape index: {}]
  %s2 = inlined_call_operand.vmem [shape: f32[1,32], index: 2, kind: input, shape index: {}]
  %s3 = inlined_call_operand.vmem [shape: f32[32,16], index: 3, kind: input, shape index: {}]
  %s4 = inlined_call_operand.vmem [shape: f32[1,16], index: 4, kind: input, shape index: {}]
  %s5 = inlined_call_operand.vmem [shape: f32[144,32], index: 5, kind: input, shape index: {}]
  %s6 = inlined_call_operand.vmem [shape: f32[1,32], index: 6, kind: input, shape index: {}]
  %s7 = inlined_call_operand.vmem [shape: f32[64,32], index: 7, kind: input, shape index: {}]
  %s8 = inlined_call_operand.vmem [shape: f32[1,32], index: 8, kind: input, shape index: {}]
  %s9 = inlined_call_operand.hbm [shape: f32[2,16,32], index: 9, kind: output, shape index: {}]
  %s10 = sld [smem:[#allocation0]]
  $region69: #{stem_block_forward.1} parent=0
    _
  %s12 = ssub.s32 1, %s10
  %s13 = scalar_select 0, %s12, %s10
  $region1: #{stem_block_forward.1} parent=0
    #allocation2 [shape = 'u8[16384]{0}', space=vmem, size = 0x4000, scoped, tag = 'output window, operand 0']
    #allocation3 [shape = 's32[2]{0}', space=sflag, size = 0x8, scoped, tag = 'scoped memory for stem_block_forward.1']
    %14 = vsyncpa [#allocation3], 0
    %s15 = scalar_lea.sflag [#allocation3], 1
    %16 = vsyncpa %s15, 0
    loop: start=0, step=1, limit=4
    $region2: #{stem_block_forward.1} parent=1 // loop_pre_header
      _
    $region3: #{stem_block_forward.1} parent=1 // loop_header
      %s18 = sphi 0, %s22
      %p19 = scmp.ge.s32.totalorder %s18, 4
      %s28 = sphi 0, %s30
      %s31 = sphi 0, %s28
      %s32 = sphi 0, %s31
      %s48 = sphi 0, %s32
      %s52 = sphi 0, %s52
      %s54 = sphi 0, %s52
      %s55 = sphi 0, %s54
      %s69 = sphi 0, %s55
      %s73 = sphi 0, %s73
      %s75 = sphi 0, %s73
      %s76 = sphi 0, %s75
      %s90 = sphi 0, %s76
      %s94 = sphi 0, %s94
      %s96 = sphi 0, %s94
      %s97 = sphi 0, %s96
      %s111 = sphi 0, %s97
      %s115 = sphi 0, %s115
      %s117 = sphi 0, %s115
      %s118 = sphi 0, %s117
      %s132 = sphi 0, %s118
      %s136 = sphi 0, %s136
      %s138 = sphi 0, %s136
      %s139 = sphi 0, %s138
      %s153 = sphi 0, %s139
      %s157 = sphi 0, %s157
      %s159 = sphi 0, %s157
      %s160 = sphi 0, %s159
      %s174 = sphi 0, %s160
      %s178 = sphi 0, %s178
      %s180 = sphi 0, %s178
      %s181 = sphi 0, %s180
      %s195 = sphi 0, %s181
      %s199 = sphi 0, %s199
      %s201 = sphi 0, %s199
      %s202 = sphi 0, %s201
      %s216 = sphi 0, %s202
      %s222 = sphi 0, %s224
      %s225 = sphi 0, %s222
      %s226 = sphi 0, %s225
      %s242 = sphi 0, %s226
    $region4: #{stem_block_forward.1} parent=1 // loop_header_branch
      %21 = sbr.rel (%p19) target = $region8
    $region5: #{stem_block_forward.1} parent=1 // loop_body
      %s23 = ssub.s32 %s18, 1
      %s24 = ssub.s32 %s18, 2
      %s25 = sadd.s32 %s18, 1
      %s26 = ssub.s32 %s18, %s25
      %p27 = scmp.eq.s32.totalorder %s26, 0
      %s29 = sadd.s32 %s28, 1
      %s30 = scalar_select %p27, %s28, %s29
      %p33 = pneg %p27
      %p34 = scmp.eq.s32.totalorder %s18, 1
      %p35 = por %p33, %p34
      %p36 = scmp.ne.s32.totalorder %s28, %s31
      %p37 = scmp.eq.s32.totalorder %s18, 0
      %p38 = por %p36, %p37
      %p39 = scmp.ne.s32.totalorder %s28, %s31
      %p40 = scmp.eq.s32.totalorder %s23, 1
      %p41 = por %p39, %p40
      %p42 = scmp.ne.s32.totalorder %s31, %s32
      %p43 = scmp.eq.s32.totalorder %s23, 0
      %p44 = por %p42, %p43
      %p45 = scmp.ne.s32.totalorder %s31, %s32
      %p46 = scmp.eq.s32.totalorder %s24, 1
      %p47 = por %p45, %p46
      %p49 = scmp.ne.s32.totalorder %s32, %s48
      %p50 = scmp.eq.s32.totalorder %s24, 0
      %p51 = por %p49, %p50
      %s53 = sadd.s32 %s52, 1
      %p56 = scmp.eq.s32.totalorder %s18, 1
      %p57 = scmp.ne.s32.totalorder %s52, %s54
      %p58 = scmp.eq.s32.totalorder %s18, 0
      %p59 = por %p57, %p58
      %p60 = scmp.ne.s32.totalorder %s52, %s54
      %p61 = scmp.eq.s32.totalorder %s23, 1
      %p62 = por %p60, %p61
      %p63 = scmp.ne.s32.totalorder %s54, %s55
      %p64 = scmp.eq.s32.totalorder %s23, 0
      %p65 = por %p63, %p64
      %p66 = scmp.ne.s32.totalorder %s54, %s55
      %p67 = scmp.eq.s32.totalorder %s24, 1
      %p68 = por %p66, %p67
      %p70 = scmp.ne.s32.totalorder %s55, %s69
      %p71 = scmp.eq.s32.totalorder %s24, 0
      %p72 = por %p70, %p71
      %s74 = sadd.s32 %s73, 1
      %p77 = scmp.eq.s32.totalorder %s18, 1
      %p78 = scmp.ne.s32.totalorder %s73, %s75
      %p79 = scmp.eq.s32.totalorder %s18, 0
      %p80 = por %p78, %p79
      %p81 = scmp.ne.s32.totalorder %s73, %s75
      %p82 = scmp.eq.s32.totalorder %s23, 1
      %p83 = por %p81, %p82
      %p84 = scmp.ne.s32.totalorder %s75, %s76
      %p85 = scmp.eq.s32.totalorder %s23, 0
      %p86 = por %p84, %p85
      %p87 = scmp.ne.s32.totalorder %s75, %s76
      %p88 = scmp.eq.s32.totalorder %s24, 1
      %p89 = por %p87, %p88
      %p91 = scmp.ne.s32.totalorder %s76, %s90
      %p92 = scmp.eq.s32.totalorder %s24, 0
      %p93 = por %p91, %p92
      %s95 = sadd.s32 %s94, 1
      %p98 = scmp.eq.s32.totalorder %s18, 1
      %p99 = scmp.ne.s32.totalorder %s94, %s96
      %p100 = scmp.eq.s32.totalorder %s18, 0
      %p101 = por %p99, %p100
      %p102 = scmp.ne.s32.totalorder %s94, %s96
      %p103 = scmp.eq.s32.totalorder %s23, 1
      %p104 = por %p102, %p103
      %p105 = scmp.ne.s32.totalorder %s96, %s97
      %p106 = scmp.eq.s32.totalorder %s23, 0
      %p107 = por %p105, %p106
      %p108 = scmp.ne.s32.totalorder %s96, %s97
      %p109 = scmp.eq.s32.totalorder %s24, 1
      %p110 = por %p108, %p109
      %p112 = scmp.ne.s32.totalorder %s97, %s111
      %p113 = scmp.eq.s32.totalorder %s24, 0
      %p114 = por %p112, %p113
      %s116 = sadd.s32 %s115, 1
      %p119 = scmp.eq.s32.totalorder %s18, 1
      %p120 = scmp.ne.s32.totalorder %s115, %s117
      %p121 = scmp.eq.s32.totalorder %s18, 0
      %p122 = por %p120, %p121
      %p123 = scmp.ne.s32.totalorder %s115, %s117
      %p124 = scmp.eq.s32.totalorder %s23, 1
      %p125 = por %p123, %p124
      %p126 = scmp.ne.s32.totalorder %s117, %s118
      %p127 = scmp.eq.s32.totalorder %s23, 0
      %p128 = por %p126, %p127
      %p129 = scmp.ne.s32.totalorder %s117, %s118
      %p130 = scmp.eq.s32.totalorder %s24, 1
      %p131 = por %p129, %p130
      %p133 = scmp.ne.s32.totalorder %s118, %s132
      %p134 = scmp.eq.s32.totalorder %s24, 0
      %p135 = por %p133, %p134
      %s137 = sadd.s32 %s136, 1
      %p140 = scmp.eq.s32.totalorder %s18, 1
      %p141 = scmp.ne.s32.totalorder %s136, %s138
      %p142 = scmp.eq.s32.totalorder %s18, 0
      %p143 = por %p141, %p142
      %p144 = scmp.ne.s32.totalorder %s136, %s138
      %p145 = scmp.eq.s32.totalorder %s23, 1
      %p146 = por %p144, %p145
      %p147 = scmp.ne.s32.totalorder %s138, %s139
      %p148 = scmp.eq.s32.totalorder %s23, 0
      %p149 = por %p147, %p148
      %p150 = scmp.ne.s32.totalorder %s138, %s139
      %p151 = scmp.eq.s32.totalorder %s24, 1
      %p152 = por %p150, %p151
      %p154 = scmp.ne.s32.totalorder %s139, %s153
      %p155 = scmp.eq.s32.totalorder %s24, 0
      %p156 = por %p154, %p155
      %s158 = sadd.s32 %s157, 1
      %p161 = scmp.eq.s32.totalorder %s18, 1
      %p162 = scmp.ne.s32.totalorder %s157, %s159
      %p163 = scmp.eq.s32.totalorder %s18, 0
      %p164 = por %p162, %p163
      %p165 = scmp.ne.s32.totalorder %s157, %s159
      %p166 = scmp.eq.s32.totalorder %s23, 1
      %p167 = por %p165, %p166
      %p168 = scmp.ne.s32.totalorder %s159, %s160
      %p169 = scmp.eq.s32.totalorder %s23, 0
      %p170 = por %p168, %p169
      %p171 = scmp.ne.s32.totalorder %s159, %s160
      %p172 = scmp.eq.s32.totalorder %s24, 1
      %p173 = por %p171, %p172
      %p175 = scmp.ne.s32.totalorder %s160, %s174
      %p176 = scmp.eq.s32.totalorder %s24, 0
      %p177 = por %p175, %p176
      %s179 = sadd.s32 %s178, 1
      %p182 = scmp.eq.s32.totalorder %s18, 1
      %p183 = scmp.ne.s32.totalorder %s178, %s180
      %p184 = scmp.eq.s32.totalorder %s18, 0
      %p185 = por %p183, %p184
      %p186 = scmp.ne.s32.totalorder %s178, %s180
      %p187 = scmp.eq.s32.totalorder %s23, 1
      %p188 = por %p186, %p187
      %p189 = scmp.ne.s32.totalorder %s180, %s181
      %p190 = scmp.eq.s32.totalorder %s23, 0
      %p191 = por %p189, %p190
      %p192 = scmp.ne.s32.totalorder %s180, %s181
      %p193 = scmp.eq.s32.totalorder %s24, 1
      %p194 = por %p192, %p193
      %p196 = scmp.ne.s32.totalorder %s181, %s195
      %p197 = scmp.eq.s32.totalorder %s24, 0
      %p198 = por %p196, %p197
      %s200 = sadd.s32 %s199, 1
      %p203 = scmp.eq.s32.totalorder %s18, 1
      %p204 = scmp.ne.s32.totalorder %s199, %s201
      %p205 = scmp.eq.s32.totalorder %s18, 0
      %p206 = por %p204, %p205
      %p207 = scmp.ne.s32.totalorder %s199, %s201
      %p208 = scmp.eq.s32.totalorder %s23, 1
      %p209 = por %p207, %p208
      %p210 = scmp.ne.s32.totalorder %s201, %s202
      %p211 = scmp.eq.s32.totalorder %s23, 0
      %p212 = por %p210, %p211
      %p213 = scmp.ne.s32.totalorder %s201, %s202
      %p214 = scmp.eq.s32.totalorder %s24, 1
      %p215 = por %p213, %p214
      %p217 = scmp.ne.s32.totalorder %s202, %s216
      %p218 = scmp.eq.s32.totalorder %s24, 0
      %p219 = por %p217, %p218
      %s220 = ssub.s32 %s18, %s25
      %p221 = scmp.eq.s32.totalorder %s220, 0
      %s223 = sadd.s32 %s222, 1
      %s224 = scalar_select %p221, %s222, %s223
      %p227 = pneg %p221
      %p228 = scmp.eq.s32.totalorder %s18, 1
      %p229 = por %p227, %p228
      %p230 = scmp.ne.s32.totalorder %s222, %s225
      %p231 = scmp.eq.s32.totalorder %s18, 0
      %p232 = por %p230, %p231
      %p233 = scmp.ne.s32.totalorder %s222, %s225
      %p234 = scmp.eq.s32.totalorder %s23, 1
      %p235 = por %p233, %p234
      %p236 = scmp.ne.s32.totalorder %s225, %s226
      %p237 = scmp.eq.s32.totalorder %s23, 0
      %p238 = por %p236, %p237
      %p239 = scmp.ne.s32.totalorder %s225, %s226
      %p240 = scmp.eq.s32.totalorder %s24, 1
      %p241 = por %p239, %p240
      %p243 = scmp.ne.s32.totalorder %s226, %s242
      %p244 = scmp.eq.s32.totalorder %s24, 0
      %p245 = por %p243, %p244
      %p246 = scmp.le.s32.totalorder 1, %s18
      %p247 = scmp.lt.s32.totalorder %s18, 3
      %p248 = pnand %p246, %p247
      %p249 = pneg %p248
      // Predicated region
      $region9: #{stem_block_forward.1} parent=5 // pred_check
        _
      $region10: #{stem_block_forward.1} parent=5 // pred_check_branch
        %251 = sbr.rel (%p248) target = $region12
      $region11: #{stem_block_forward.1} parent=5 // pred_region
        %s252 = ssub.s32 %s18, 1
        // Predicated region
        $region13: #{stem_block_forward.1} parent=11 // pred_check
          %p253 = pneg %p65
        $region14: #{stem_block_forward.1} parent=11 // pred_check_branch
          %255 = sbr.rel (%p253) target = $region16
        $region15: #{stem_block_forward.1} parent=11 // pred_region
          _
        $region16: #{stem_block_forward.1} parent=11 // pred_fallthru
          _
        // Predicated region
        $region17: #{stem_block_forward.1} parent=11 // pred_check
          %p256 = pneg %p86
        $region18: #{stem_block_forward.1} parent=11 // pred_check_branch
          %258 = sbr.rel (%p256) target = $region20
        $region19: #{stem_block_forward.1} parent=11 // pred_region
          _
        $region20: #{stem_block_forward.1} parent=11 // pred_fallthru
          _
        // Predicated region
        $region21: #{stem_block_forward.1} parent=11 // pred_check
          %p259 = pneg %p107
        $region22: #{stem_block_forward.1} parent=11 // pred_check_branch
          %261 = sbr.rel (%p259) target = $region24
        $region23: #{stem_block_forward.1} parent=11 // pred_region
          _
        $region24: #{stem_block_forward.1} parent=11 // pred_fallthru
          _
        // Predicated region
        $region25: #{stem_block_forward.1} parent=11 // pred_check
          %p262 = pneg %p128
        $region26: #{stem_block_forward.1} parent=11 // pred_check_branch
          %264 = sbr.rel (%p262) target = $region28
        $region27: #{stem_block_forward.1} parent=11 // pred_region
          _
        $region28: #{stem_block_forward.1} parent=11 // pred_fallthru
          _
        // Predicated region
        $region29: #{stem_block_forward.1} parent=11 // pred_check
          %p265 = pneg %p149
        $region30: #{stem_block_forward.1} parent=11 // pred_check_branch
          %267 = sbr.rel (%p265) target = $region32
        $region31: #{stem_block_forward.1} parent=11 // pred_region
          _
        $region32: #{stem_block_forward.1} parent=11 // pred_fallthru
          _
        // Predicated region
        $region33: #{stem_block_forward.1} parent=11 // pred_check
          %p268 = pneg %p170
        $region34: #{stem_block_forward.1} parent=11 // pred_check_branch
          %270 = sbr.rel (%p268) target = $region36
        $region35: #{stem_block_forward.1} parent=11 // pred_region
          _
        $region36: #{stem_block_forward.1} parent=11 // pred_fallthru
          _
        // Predicated region
        $region37: #{stem_block_forward.1} parent=11 // pred_check
          %p271 = pneg %p191
        $region38: #{stem_block_forward.1} parent=11 // pred_check_branch
          %273 = sbr.rel (%p271) target = $region40
        $region39: #{stem_block_forward.1} parent=11 // pred_region
          _
        $region40: #{stem_block_forward.1} parent=11 // pred_fallthru
          _
        // Predicated region
        $region41: #{stem_block_forward.1} parent=11 // pred_check
          %p274 = pneg %p212
        $region42: #{stem_block_forward.1} parent=11 // pred_check_branch
          %276 = sbr.rel (%p274) target = $region44
        $region43: #{stem_block_forward.1} parent=11 // pred_region
          _
        $region44: #{stem_block_forward.1} parent=11 // pred_fallthru
          _
      $region12: #{stem_block_forward.1} parent=5 // pred_fallthru
        _
      %p277 = scmp.lt.s32.totalorder %s18, 2
      // Predicated region
      $region45: #{stem_block_forward.1} parent=5 // pred_check
        %p278 = pneg %p277
      $region46: #{stem_block_forward.1} parent=5 // pred_check_branch
        %280 = sbr.rel (%p278) target = $region48
      $region47: #{stem_block_forward.1} parent=5 // pred_region
        // Predicated region
        $region49: #{stem_block_forward.1} parent=47 // pred_check
          %p281 = pneg %p38
        $region50: #{stem_block_forward.1} parent=47 // pred_check_branch
          %283 = sbr.rel (%p281) target = $region52
        $region51: #{stem_block_forward.1} parent=47 // pred_region
          %p284 = scmp.lt.s32.totalorder %s18, 1
          %s285 = scalar_select %p284, %s18, 1
          %s286 = smul.addr %s285, 8
          %s287 = smul.addr %s286, 8
          %s288 = scalar_lea.vmem %s0, %s287
        $region52: #{stem_block_forward.1} parent=47 // pred_fallthru
          _
      $region48: #{stem_block_forward.1} parent=5 // pred_fallthru
        _
      %p289 = scmp.le.s32.totalorder 1, %s18
      %p290 = scmp.lt.s32.totalorder %s18, 3
      %p291 = pnand %p289, %p290
      %p292 = pneg %p291
      // Predicated region
      $region53: #{stem_block_forward.1} parent=5 // pred_check
        _
      $region54: #{stem_block_forward.1} parent=5 // pred_check_branch
        %294 = sbr.rel (%p291) target = $region56
      $region55: #{stem_block_forward.1} parent=5 // pred_region
        %s295 = ssub.s32 %s18, 1
        %p296 = scmp.lt.s32.totalorder %s23, 1
        %s297 = scalar_select %p296, %s23, 1
        %s298 = smul.addr %s297, 8
        %s299 = smul.addr %s298, 8
        %s300 = scalar_lea.vmem %s0, %s299
        %p301 = pneg %p44
        %p302 = pneg %p41
        %p303 = pneg %p65
        %p304 = pneg %p62
        %p305 = pneg %p86
        %p306 = pneg %p83
        %p307 = pneg %p107
        %p308 = pneg %p104
        %p309 = pneg %p128
        %p310 = pneg %p125
        %p311 = pneg %p149
        %p312 = pneg %p146
        %p313 = pneg %p170
        %p314 = pneg %p167
        %p315 = pneg %p191
        %p316 = pneg %p188
        %p317 = pneg %p212
        %p318 = pneg %p209
        %p319 = pneg %p238
        %p320 = pneg %p235
        %s321 = sand.u32 %s225, 1
        %s322 = scalar_lea.sflag [#allocation3], %s321
        %s323 = sand.u32 %s225, 1
        %s324 = smul.addr %s323, 16
        %s325 = scalar_lea.vmem [#allocation2], %s324
        %p326 = scmp.lt.s32.totalorder %s23, 1
        %s327 = scalar_select %p326, %s23, 1
        %s328 = smul.addr %s327, 8
        %s329 = smul.addr %s328, 8
        %s330 = scalar_lea.vmem %s0, %s329
        %v331 = vld [vmem:[%s330] sm:$0xff]
        %v332 = vld [vmem:[%s330 + $0x8] sm:$0xff]
        %v333 = vld [vmem:[%s330 + $0x10] sm:$0xff]
        %v334 = vld [vmem:[%s330 + $0x18] sm:$0xff]
        %v335 = vld [vmem:[%s330 + $0x20] sm:$0xff]
        %v336 = vld [vmem:[%s330 + $0x28] sm:$0xff]
        %v337 = vld [vmem:[%s330 + $0x30] sm:$0xff]
        %v338 = vld [vmem:[%s330 + $0x38] sm:$0xff]
        %v339 = vld [vmem:[%s1] sm:$0xff]
        %v340 = vld [vmem:[%s1 + $0x8] sm:$0x1]
        %v341 = vld [vmem:[%s2] sm:$0x1]
        %v343 = vlaneseq
        %v344 = vshrl.u32 %v343, 7
        %v345 = vsub.s32 0, %v344
        %v346 = vrot.slane %v341, %v345
        %vm348 = vcmask 72704
        %v350 = vsel %vm348, %v331, 0
        %v353 = vsel %vm348, %v332, 0
        %v356 = vsel %vm348, %v333, 0
        %v359 = vsel %vm348, %v334, 0
        %v362 = vsel %vm348, %v335, 0
        %v365 = vsel %vm348, %v336, 0
        %v368 = vsel %vm348, %v337, 0
        %v371 = vsel %vm348, %v338, 0
        %vm373 = vcmask 1040384
        %v375 = vsel %vm373, %v340, 0
        %377 = vmatprep.subr.mxu0 0.0
        %378 = vmatpush1.msra.mxu0 0.0
        %379 = vmatprep.subr.mxu0 0.0
        %380 = vmatpush1.msra.mxu0 0.0
        %381 = vmatprep.subr.mxu0 0.0
        %382 = vmatpush1.msra.mxu0 0.0
        %383 = vmatprep.subr.mxu0 0.0
        %384 = vmatpush1.msra.mxu0 0.0
        %385 = vmatprep.subr.mxu0 0.0
        %386 = vmatpush1.msra.mxu0 0.0
        %387 = vmatprep.subr.mxu0 0.0
        %388 = vmatpush1.msra.mxu0 0.0
        %389 = vmatprep.subr.mxu0 0.0
        %390 = vmatpush1.msra.mxu0 0.0
        %391 = vmatprep.subr.mxu0 0.0
        %392 = vmatpush1.msra.mxu0 0.0
        %393 = vmatprep.subr.mxu0 0.0
        %394 = vmatpush1.msra.mxu0 0.0
        %395 = vmatprep.subr.mxu0 0.0
        %396 = vmatpush1.msra.mxu0 0.0
        %397 = vmatprep.subr.mxu0 0.0
        %398 = vmatpush1.msra.mxu0 0.0
        %399 = vmatprep.subr.mxu0 0.0
        %400 = vmatpush1.msra.mxu0 0.0
        %401 = vmatprep.subr.mxu0 0.0
        %402 = vmatpush1.msra.mxu0 0.0
        %403 = vmatprep.subr.mxu0 0.0
        %404 = vmatpush1.msra.mxu0 0.0
        %405 = vmatprep.subr.mxu0 0.0
        %406 = vmatpush1.msra.mxu0 %v375
        %407 = vmatprep.subr.mxu0 0.0
        %408 = vmatpush1.msra.mxu0 %v339
        %409 = vmatprep.subr.mxu0 0.0
        %410 = vmatpush2.msra.mxu0 0.0
        %411 = vmatprep.subr.mxu0 0.0
        %412 = vmatpush2.msra.mxu0 0.0
        %413 = vmatprep.subr.mxu0 0.0
        %414 = vmatpush2.msra.mxu0 0.0
        %415 = vmatprep.subr.mxu0 0.0
        %416 = vmatpush2.msra.mxu0 0.0
        %417 = vmatprep.subr.mxu0 0.0
        %418 = vmatpush2.msra.mxu0 0.0
        %419 = vmatprep.subr.mxu0 0.0
        %420 = vmatpush2.msra.mxu0 0.0
        %421 = vmatprep.subr.mxu0 0.0
        %422 = vmatpush2.msra.mxu0 0.0
        %423 = vmatprep.subr.mxu0 0.0
        %424 = vmatpush2.msra.mxu0 0.0
        %425 = vmatprep.subr.mxu0 0.0
        %426 = vmatpush2.msra.mxu0 0.0
        %427 = vmatprep.subr.mxu0 0.0
        %428 = vmatpush2.msra.mxu0 0.0
        %429 = vmatprep.subr.mxu0 0.0
        %430 = vmatpush2.msra.mxu0 0.0
        %431 = vmatprep.subr.mxu0 0.0
        %432 = vmatpush2.msra.mxu0 0.0
        %433 = vmatprep.subr.mxu0 0.0
        %434 = vmatpush2.msra.mxu0 0.0
        %435 = vmatprep.subr.mxu0 0.0
        %436 = vmatpush2.msra.mxu0 0.0
        %437 = vmatprep.subr.mxu0 0.0
        %438 = vmatpush2.msra.mxu0 0.0
        %439 = vmatprep.subr.mxu0 0.0
        %440 = vmatpush2.msra.mxu0 0.0
        %441 = vmatprep.mubr.f32.mxu0 0.0
        %442 = vmatmul.mubr.f32.gmra.mxu0 %v350
        %v443 = vpop.f32.mrf.mxu0
        %v444 = vadd.f32 %v346, %v443
        %v445 = vpop.f32.mrf.mxu0
        %446 = vmatprep.mubr.f32.mxu0 0.0
        %447 = vmatmul.mubr.f32.gmra.mxu0 %v353
        %v448 = vpop.f32.mrf.mxu0
        %v449 = vadd.f32 %v346, %v448
        %v450 = vpop.f32.mrf.mxu0
        %451 = vmatprep.mubr.f32.mxu0 0.0
        %452 = vmatmul.mubr.f32.gmra.mxu0 %v356
        %v453 = vpop.f32.mrf.mxu0
        %v454 = vadd.f32 %v346, %v453
        %v455 = vpop.f32.mrf.mxu0
        %456 = vmatprep.mubr.f32.mxu0 0.0
        %457 = vmatmul.mubr.f32.gmra.mxu0 %v359
        %v458 = vpop.f32.mrf.mxu0
        %v459 = vadd.f32 %v346, %v458
        %v460 = vpop.f32.mrf.mxu0
        %461 = vmatprep.mubr.f32.mxu0 0.0
        %462 = vmatmul.mubr.f32.gmra.mxu0 %v362
        %v463 = vpop.f32.mrf.mxu0
        %v464 = vadd.f32 %v346, %v463
        %v465 = vpop.f32.mrf.mxu0
        %466 = vmatprep.mubr.f32.mxu0 0.0
        %467 = vmatmul.mubr.f32.gmra.mxu0 %v365
        %v468 = vpop.f32.mrf.mxu0
        %v469 = vadd.f32 %v346, %v468
        %v470 = vpop.f32.mrf.mxu0
        %471 = vmatprep.mubr.f32.mxu0 0.0
        %472 = vmatmul.mubr.f32.gmra.mxu0 %v368
        %v473 = vpop.f32.mrf.mxu0
        %v474 = vadd.f32 %v346, %v473
        %v475 = vpop.f32.mrf.mxu0
        %476 = vmatprep.mubr.f32.mxu0 0.0
        %477 = vmatmul.mubr.f32.gmra.mxu0 %v371
        %v478 = vpop.f32.mrf.mxu0
        %v479 = vadd.f32 %v346, %v478
        %v480 = vpop.f32.mrf.mxu0
        %481 = vdwg.mxu0
        %v482 = vmax.f32 %v444, %v454
        %v483 = vmax.f32 %v449, %v459
        %v484 = vmax.f32 %v464, %v474
        %v485 = vmax.f32 %v469, %v479
        %v486 = vmax.f32 %v482, %v484
        %v487 = vmax.f32 %v483, %v485
        %v488 = vld [vmem:[%s3] sm:$0xff]
        %v489 = vld [vmem:[%s3 + $0x8] sm:$0xff]
        %v490 = vld [vmem:[%s3 + $0x10] sm:$0xff]
        %v491 = vld [vmem:[%s3 + $0x18] sm:$0xff]
        %v492 = vld [vmem:[%s4] sm:$0x1]
        %v494 = vlaneseq
        %v495 = vshrl.u32 %v494, 7
        %v496 = vsub.s32 0, %v495
        %v497 = vrot.slane %v492, %v496
        %vm499 = vcmask 261120
        %v501 = vsel %vm499, %v444, 0
        %v504 = vsel %vm499, %v449, 0
        %v507 = vsel %vm499, %v454, 0
        %v510 = vsel %vm499, %v459, 0
        %v513 = vsel %vm499, %v464, 0
        %v516 = vsel %vm499, %v469, 0
        %v519 = vsel %vm499, %v474, 0
        %v522 = vsel %vm499, %v479, 0
        %524 = vmatprep.subr.mxu0 0.0
        %525 = vmatpush1.msra.mxu0 0.0
        %526 = vmatprep.subr.mxu0 0.0
        %527 = vmatpush1.msra.mxu0 0.0
        %528 = vmatprep.subr.mxu0 0.0
        %529 = vmatpush1.msra.mxu0 0.0
        %530 = vmatprep.subr.mxu0 0.0
        %531 = vmatpush1.msra.mxu0 0.0
        %532 = vmatprep.subr.mxu0 0.0
        %533 = vmatpush1.msra.mxu0 0.0
        %534 = vmatprep.subr.mxu0 0.0
        %535 = vmatpush1.msra.mxu0 0.0
        %536 = vmatprep.subr.mxu0 0.0
        %537 = vmatpush1.msra.mxu0 0.0
        %538 = vmatprep.subr.mxu0 0.0
        %539 = vmatpush1.msra.mxu0 0.0
        %540 = vmatprep.subr.mxu0 0.0
        %541 = vmatpush1.msra.mxu0 0.0
        %542 = vmatprep.subr.mxu0 0.0
        %543 = vmatpush1.msra.mxu0 0.0
        %544 = vmatprep.subr.mxu0 0.0
        %545 = vmatpush1.msra.mxu0 0.0
        %546 = vmatprep.subr.mxu0 0.0
        %547 = vmatpush1.msra.mxu0 0.0
        %548 = vmatprep.subr.mxu0 0.0
        %549 = vmatpush1.msra.mxu0 %v491
        %550 = vmatprep.subr.mxu0 0.0
        %551 = vmatpush1.msra.mxu0 %v490
        %552 = vmatprep.subr.mxu0 0.0
        %553 = vmatpush1.msra.mxu0 %v489
        %554 = vmatprep.subr.mxu0 0.0
        %555 = vmatpush1.msra.mxu0 %v488
        %556 = vmatprep.subr.mxu0 0.0
        %557 = vmatpush2.msra.mxu0 0.0
        %558 = vmatprep.subr.mxu0 0.0
        %559 = vmatpush2.msra.mxu0 0.0
        %560 = vmatprep.subr.mxu0 0.0
        %561 = vmatpush2.msra.mxu0 0.0
        %562 = vmatprep.subr.mxu0 0.0
        %563 = vmatpush2.msra.mxu0 0.0
        %564 = vmatprep.subr.mxu0 0.0
        %565 = vmatpush2.msra.mxu0 0.0
        %566 = vmatprep.subr.mxu0 0.0
        %567 = vmatpush2.msra.mxu0 0.0
        %568 = vmatprep.subr.mxu0 0.0
        %569 = vmatpush2.msra.mxu0 0.0
        %570 = vmatprep.subr.mxu0 0.0
        %571 = vmatpush2.msra.mxu0 0.0
        %572 = vmatprep.subr.mxu0 0.0
        %573 = vmatpush2.msra.mxu0 0.0
        %574 = vmatprep.subr.mxu0 0.0
        %575 = vmatpush2.msra.mxu0 0.0
        %576 = vmatprep.subr.mxu0 0.0
        %577 = vmatpush2.msra.mxu0 0.0
        %578 = vmatprep.subr.mxu0 0.0
        %579 = vmatpush2.msra.mxu0 0.0
        %580 = vmatprep.subr.mxu0 0.0
        %581 = vmatpush2.msra.mxu0 0.0
        %582 = vmatprep.subr.mxu0 0.0
        %583 = vmatpush2.msra.mxu0 0.0
        %584 = vmatprep.subr.mxu0 0.0
        %585 = vmatpush2.msra.mxu0 0.0
        %586 = vmatprep.subr.mxu0 0.0
        %587 = vmatpush2.msra.mxu0 0.0
        %588 = vmatprep.mubr.f32.mxu0 0.0
        %589 = vmatmul.mubr.f32.gmra.mxu0 %v501
        %v590 = vpop.f32.mrf.mxu0
        %v591 = vadd.f32 %v497, %v590
        %v592 = vpop.f32.mrf.mxu0
        %593 = vmatprep.mubr.f32.mxu0 0.0
        %594 = vmatmul.mubr.f32.gmra.mxu0 %v504
        %v595 = vpop.f32.mrf.mxu0
        %v596 = vadd.f32 %v497, %v595
        %v597 = vpop.f32.mrf.mxu0
        %598 = vmatprep.mubr.f32.mxu0 0.0
        %599 = vmatmul.mubr.f32.gmra.mxu0 %v507
        %v600 = vpop.f32.mrf.mxu0
        %v601 = vadd.f32 %v497, %v600
        %v602 = vpop.f32.mrf.mxu0
        %603 = vmatprep.mubr.f32.mxu0 0.0
        %604 = vmatmul.mubr.f32.gmra.mxu0 %v510
        %v605 = vpop.f32.mrf.mxu0
        %v606 = vadd.f32 %v497, %v605
        %v607 = vpop.f32.mrf.mxu0
        %608 = vmatprep.mubr.f32.mxu0 0.0
        %609 = vmatmul.mubr.f32.gmra.mxu0 %v513
        %v610 = vpop.f32.mrf.mxu0
        %v611 = vadd.f32 %v497, %v610
        %v612 = vpop.f32.mrf.mxu0
        %613 = vmatprep.mubr.f32.mxu0 0.0
        %614 = vmatmul.mubr.f32.gmra.mxu0 %v516
        %v615 = vpop.f32.mrf.mxu0
        %v616 = vadd.f32 %v497, %v615
        %v617 = vpop.f32.mrf.mxu0
        %618 = vmatprep.mubr.f32.mxu0 0.0
        %619 = vmatmul.mubr.f32.gmra.mxu0 %v519
        %v620 = vpop.f32.mrf.mxu0
        %v621 = vadd.f32 %v497, %v620
        %v622 = vpop.f32.mrf.mxu0
        %623 = vmatprep.mubr.f32.mxu0 0.0
        %624 = vmatmul.mubr.f32.gmra.mxu0 %v522
        %v625 = vpop.f32.mrf.mxu0
        %v626 = vadd.f32 %v497, %v625
        %v627 = vpop.f32.mrf.mxu0
        %628 = vdwg.mxu0
        %v629 = vlaneseq
        %v630 = vshrl.u32 %v629, 7
        %v631 = vadd.s32 %v630, 8
        %vm632 = vcmp.lt.s32.totalorder %v630, 0
        %v633 = vsub.s32 0, %v630
        %v634 = vsel %vm632, %v633, %v630
        %v635 = vshrl.u32 %v634, 2
        %v636 = vand.u32 %v634, 3
        %v637 = vsub.s32 0, %v636
        %v638 = vsel %vm632, %v637, %v636
        %vm639 = vcmp.lt.s32.totalorder %v631, 0
        %v640 = vsub.s32 0, %v631
        %v641 = vsel %vm639, %v640, %v631
        %v642 = vshrl.u32 %v641, 2
        %v643 = vand.u32 %v641, 3
        %v644 = vsub.s32 0, %v643
        %v645 = vsel %vm639, %v644, %v643
        %vm646 = vcmp.ne.s32.totalorder %v638, 0
        %vm647 = vcmp.ne.s32.totalorder %v645, 0
        %vm648 = vcmp.lt.s32.totalorder %v638, 0
        %vm649 = vcmp.lt.s32.totalorder %v645, 0
        %vm650 = vmand %vm648, %vm646
        %vm651 = vmand %vm649, %vm647
        %v652 = vadd.s32 %v638, 4
        %v653 = vadd.s32 %v645, 4
        %v654 = vsel %vm650, %v652, %v638
        %v655 = vsel %vm651, %v653, %v645
        %vm656 = vcmp.eq.s32.totalorder %v654, 0
        %vm657 = vcmp.eq.s32.totalorder %v655, 0
        %vm660 = vcmask 1044480
        %v661 = vrot.slane %v621, 3
        %v662 = vrot.slane %v626, 3
        %v663 = vsel %vm660, %v661, %v662
        %v666 = vsel %vm660, 0.0, %v661
        %v667 = vsel %vm656, 0.0, %v666
        %v668 = vsel %vm657, 0.0, %v663
        %vm671 = vcmask 1043456
        %v672 = vrot.slane %v611, 4
        %v673 = vrot.slane %v616, 4
        %v674 = vsel %vm671, %v672, %v673
        %v676 = vsel %vm671, 0.0, %v672
        %v677 = vrot.slane %v621, 4
        %v678 = vrot.slane %v626, 4
        %v679 = vsel %vm671, %v677, %v678
        %v681 = vsel %vm671, 0.0, %v677
        %v684 = vrot.slane %v601, 7
        %v685 = vrot.slane %v606, 7
        %v686 = vsel %vm373, %v684, %v685
        %v689 = vsel %vm373, 0.0, %v684
        %v690 = vsel %vm656, 0.0, %v689
        %v691 = vsel %vm657, 0.0, %v686
        %v692 = vrot.slane %v621, 7
        %v693 = vrot.slane %v626, 7
        %v694 = vsel %vm373, %v692, %v693
        %v697 = vsel %vm373, 0.0, %v692
        %v698 = vsel %vm656, 0.0, %v697
        %v699 = vsel %vm657, 0.0, %v694
        %701 = vrot.lane.b32.xlu0 %v676, 16
        %v702 = vpop.permute.xlu0 %701
        %703 = vrot.lane.b32.xlu0 %v674, 16
        %v704 = vpop.permute.xlu0 %703
        %708 = vrot.lane.b32.xlu0 %v681, 32
        %v709 = vpop.permute.xlu0 %708
        %710 = vrot.lane.b32.xlu0 %v679, 32
        %v711 = vpop.permute.xlu0 %710
        %716 = vrot.lane.b32.xlu0 %v690, 48
        %v717 = vpop.permute.xlu0 %716
        %718 = vrot.lane.b32.xlu0 %v691, 48
        %v719 = vpop.permute.xlu0 %718
        %724 = vrot.lane.b32.xlu0 %v591, 64
        %v725 = vpop.permute.xlu0 %724
        %726 = vrot.lane.b32.xlu0 %v596, 64
        %v727 = vpop.permute.xlu0 %726
        %730 = vrot.lane.b32.xlu0 %v601, 80
        %v731 = vpop.permute.xlu0 %730
        %732 = vrot.lane.b32.xlu0 %v606, 80
        %v733 = vpop.permute.xlu0 %732
        %738 = vrot.lane.b32.xlu0 %v698, 96
        %v739 = vpop.permute.xlu0 %738
        %740 = vrot.lane.b32.xlu0 %v699, 96
        %v741 = vpop.permute.xlu0 %740
        %744 = vrot.lane.b32.xlu0 %v611, 112
        %v745 = vpop.permute.xlu0 %744
        %746 = vrot.lane.b32.xlu0 %v616, 112
        %v747 = vpop.permute.xlu0 %746
        %vm750 = vcmask 130048
        %v751 = vsel %vm750, %v667, %v702
        %v752 = vsel %vm750, %v668, %v704
        %v753 = vsel %vm499, %v751, %v709
        %v754 = vsel %vm499, %v752, %v711
        %vm755 = vcmask 392192
        %v756 = vsel %vm755, %v753, %v717
        %v757 = vsel %vm755, %v754, %v719
        %vm758 = vcmask 523264
        %v759 = vsel %vm758, %v756, %v725
        %v760 = vsel %vm758, %v757, %v727
        %vm761 = vcmask 654336
        %v762 = vsel %vm761, %v759, %v731
        %v763 = vsel %vm761, %v760, %v733
        %vm764 = vcmask 785408
        %v765 = vsel %vm764, %v762, %v739
        %v766 = vsel %vm764, %v763, %v741
        %vm767 = vcmask 916480
        %v768 = vsel %vm767, %v765, %v745
        %v769 = vsel %vm767, %v766, %v747
        %v770 = vld [vmem:[%s5] sm:$0xff]
        %v771 = vld [vmem:[%s5 + $0x8] sm:$0xff]
        %v772 = vld [vmem:[%s5 + $0x10] sm:$0xff]
        %v773 = vld [vmem:[%s5 + $0x18] sm:$0xff]
        %v774 = vld [vmem:[%s5 + $0x20] sm:$0xff]
        %v775 = vld [vmem:[%s5 + $0x28] sm:$0xff]
        %v776 = vld [vmem:[%s5 + $0x30] sm:$0xff]
        %v777 = vld [vmem:[%s5 + $0x38] sm:$0xff]
        %v778 = vld [vmem:[%s5 + $0x40] sm:$0xff]
        %v779 = vld [vmem:[%s5 + $0x48] sm:$0xff]
        %v780 = vld [vmem:[%s5 + $0x50] sm:$0xff]
        %v781 = vld [vmem:[%s5 + $0x58] sm:$0xff]
        %v782 = vld [vmem:[%s5 + $0x60] sm:$0xff]
        %v783 = vld [vmem:[%s5 + $0x68] sm:$0xff]
        %v784 = vld [vmem:[%s5 + $0x70] sm:$0xff]
        %v785 = vld [vmem:[%s5 + $0x78] sm:$0xff]
        %v786 = vld [vmem:[%s5 + $0x80] sm:$0xff]
        %v787 = vld [vmem:[%s5 + $0x88] sm:$0xff]
        %v788 = vld [vmem:[%s6] sm:$0x1]
        %v790 = vlaneseq
        %v791 = vshrl.u32 %v790, 7
        %v792 = vsub.s32 0, %v791
        %v793 = vrot.slane %v788, %v792
        %v795 = vsel %vm750, %v621, 0
        %v797 = vsel %vm750, %v626, 0
        %799 = vmatprep.subr.mxu0 0.0
        %800 = vmatpush1.msra.mxu0 %v785
        %801 = vmatprep.subr.mxu0 0.0
        %802 = vmatpush1.msra.mxu0 %v784
        %803 = vmatprep.subr.mxu0 0.0
        %804 = vmatpush1.msra.mxu0 %v783
        %805 = vmatprep.subr.mxu0 0.0
        %806 = vmatpush1.msra.mxu0 %v782
        %807 = vmatprep.subr.mxu0 0.0
        %808 = vmatpush1.msra.mxu0 %v781
        %809 = vmatprep.subr.mxu0 0.0
        %810 = vmatpush1.msra.mxu0 %v780
        %811 = vmatprep.subr.mxu0 0.0
        %812 = vmatpush1.msra.mxu0 %v779
        %813 = vmatprep.subr.mxu0 0.0
        %814 = vmatpush1.msra.mxu0 %v778
        %815 = vmatprep.subr.mxu0 0.0
        %816 = vmatpush1.msra.mxu0 %v777
        %817 = vmatprep.subr.mxu0 0.0
        %818 = vmatpush1.msra.mxu0 %v776
        %819 = vmatprep.subr.mxu0 0.0
        %820 = vmatpush1.msra.mxu0 %v775
        %821 = vmatprep.subr.mxu0 0.0
        %822 = vmatpush1.msra.mxu0 %v774
        %823 = vmatprep.subr.mxu0 0.0
        %824 = vmatpush1.msra.mxu0 %v773
        %825 = vmatprep.subr.mxu0 0.0
        %826 = vmatpush1.msra.mxu0 %v772
        %827 = vmatprep.subr.mxu0 0.0
        %828 = vmatpush1.msra.mxu0 %v771
        %829 = vmatprep.subr.mxu0 0.0
        %830 = vmatpush1.msra.mxu0 %v770
        %831 = vmatprep.subr.mxu0 0.0
        %832 = vmatpush2.msra.mxu0 0.0
        %833 = vmatprep.subr.mxu0 0.0
        %834 = vmatpush2.msra.mxu0 0.0
        %835 = vmatprep.subr.mxu0 0.0
        %836 = vmatpush2.msra.mxu0 0.0
        %837 = vmatprep.subr.mxu0 0.0
        %838 = vmatpush2.msra.mxu0 0.0
        %839 = vmatprep.subr.mxu0 0.0
        %840 = vmatpush2.msra.mxu0 0.0
        %841 = vmatprep.subr.mxu0 0.0
        %842 = vmatpush2.msra.mxu0 0.0
        %843 = vmatprep.subr.mxu0 0.0
        %844 = vmatpush2.msra.mxu0 0.0
        %845 = vmatprep.subr.mxu0 0.0
        %846 = vmatpush2.msra.mxu0 0.0
        %847 = vmatprep.subr.mxu0 0.0
        %848 = vmatpush2.msra.mxu0 0.0
        %849 = vmatprep.subr.mxu0 0.0
        %850 = vmatpush2.msra.mxu0 0.0
        %851 = vmatprep.subr.mxu0 0.0
        %852 = vmatpush2.msra.mxu0 0.0
        %853 = vmatprep.subr.mxu0 0.0
        %854 = vmatpush2.msra.mxu0 0.0
        %855 = vmatprep.subr.mxu0 0.0
        %856 = vmatpush2.msra.mxu0 0.0
        %857 = vmatprep.subr.mxu0 0.0
        %858 = vmatpush2.msra.mxu0 0.0
        %859 = vmatprep.subr.mxu0 0.0
        %860 = vmatpush2.msra.mxu0 %v787
        %861 = vmatprep.subr.mxu0 0.0
        %862 = vmatpush2.msra.mxu0 %v786
        %863 = vmatprep.mubr.f32.mxu0 %v795
        %864 = vmatmul.mubr.f32.gmra.mxu0 %v768
        %v865 = vpop.f32.mrf.mxu0
        %v866 = vadd.f32 %v793, %v865
        %v867 = vpop.f32.mrf.mxu0
        %868 = vmatprep.mubr.f32.mxu0 %v797
        %869 = vmatmul.mubr.f32.gmra.mxu0 %v769
        %v870 = vpop.f32.mrf.mxu0
        %v871 = vadd.f32 %v793, %v870
        %v872 = vpop.f32.mrf.mxu0
        %873 = vdwg.mxu0
        %876 = vrot.lane.b32.xlu0 %v486, 32
        %v877 = vpop.permute.xlu0 %876
        %878 = vrot.lane.b32.xlu0 %v487, 32
        %v879 = vpop.permute.xlu0 %878
        %v882 = vsel %vm499, %v866, %v877
        %v883 = vsel %vm499, %v871, %v879
        %v884 = vld [vmem:[%s7] sm:$0xff]
        %v885 = vld [vmem:[%s7 + $0x8] sm:$0xff]
        %v886 = vld [vmem:[%s7 + $0x10] sm:$0xff]
        %v887 = vld [vmem:[%s7 + $0x18] sm:$0xff]
        %v888 = vld [vmem:[%s7 + $0x20] sm:$0xff]
        %v889 = vld [vmem:[%s7 + $0x28] sm:$0xff]
        %v890 = vld [vmem:[%s7 + $0x30] sm:$0xff]
        %v891 = vld [vmem:[%s7 + $0x38] sm:$0xff]
        %v892 = vld [vmem:[%s8] sm:$0x1]
        %v894 = vlaneseq
        %v895 = vshrl.u32 %v894, 7
        %v896 = vsub.s32 0, %v895
        %v897 = vrot.slane %v892, %v896
        %v900 = vsel %vm758, %v882, 0
        %v903 = vsel %vm758, %v883, 0
        %905 = vmatprep.subr.mxu0 0.0
        %906 = vmatpush1.msra.mxu0 0.0
        %907 = vmatprep.subr.mxu0 0.0
        %908 = vmatpush1.msra.mxu0 0.0
        %909 = vmatprep.subr.mxu0 0.0
        %910 = vmatpush1.msra.mxu0 0.0
        %911 = vmatprep.subr.mxu0 0.0
        %912 = vmatpush1.msra.mxu0 0.0
        %913 = vmatprep.subr.mxu0 0.0
        %914 = vmatpush1.msra.mxu0 0.0
        %915 = vmatprep.subr.mxu0 0.0
        %916 = vmatpush1.msra.mxu0 0.0
        %917 = vmatprep.subr.mxu0 0.0
        %918 = vmatpush1.msra.mxu0 0.0
        %919 = vmatprep.subr.mxu0 0.0
        %920 = vmatpush1.msra.mxu0 0.0
        %921 = vmatprep.subr.mxu0 0.0
        %922 = vmatpush1.msra.mxu0 %v891
        %923 = vmatprep.subr.mxu0 0.0
        %924 = vmatpush1.msra.mxu0 %v890
        %925 = vmatprep.subr.mxu0 0.0
        %926 = vmatpush1.msra.mxu0 %v889
        %927 = vmatprep.subr.mxu0 0.0
        %928 = vmatpush1.msra.mxu0 %v888
        %929 = vmatprep.subr.mxu0 0.0
        %930 = vmatpush1.msra.mxu0 %v887
        %931 = vmatprep.subr.mxu0 0.0
        %932 = vmatpush1.msra.mxu0 %v886
        %933 = vmatprep.subr.mxu0 0.0
        %934 = vmatpush1.msra.mxu0 %v885
        %935 = vmatprep.subr.mxu0 0.0
        %936 = vmatpush1.msra.mxu0 %v884
        %937 = vmatprep.subr.mxu0 0.0
        %938 = vmatpush2.msra.mxu0 0.0
        %939 = vmatprep.subr.mxu0 0.0
        %940 = vmatpush2.msra.mxu0 0.0
        %941 = vmatprep.subr.mxu0 0.0
        %942 = vmatpush2.msra.mxu0 0.0
        %943 = vmatprep.subr.mxu0 0.0
        %944 = vmatpush2.msra.mxu0 0.0
        %945 = vmatprep.subr.mxu0 0.0
        %946 = vmatpush2.msra.mxu0 0.0
        %947 = vmatprep.subr.mxu0 0.0
        %948 = vmatpush2.msra.mxu0 0.0
        %949 = vmatprep.subr.mxu0 0.0
        %950 = vmatpush2.msra.mxu0 0.0
        %951 = vmatprep.subr.mxu0 0.0
        %952 = vmatpush2.msra.mxu0 0.0
        %953 = vmatprep.subr.mxu0 0.0
        %954 = vmatpush2.msra.mxu0 0.0
        %955 = vmatprep.subr.mxu0 0.0
        %956 = vmatpush2.msra.mxu0 0.0
        %957 = vmatprep.subr.mxu0 0.0
        %958 = vmatpush2.msra.mxu0 0.0
        %959 = vmatprep.subr.mxu0 0.0
        %960 = vmatpush2.msra.mxu0 0.0
        %961 = vmatprep.subr.mxu0 0.0
        %962 = vmatpush2.msra.mxu0 0.0
        %963 = vmatprep.subr.mxu0 0.0
        %964 = vmatpush2.msra.mxu0 0.0
        %965 = vmatprep.subr.mxu0 0.0
        %966 = vmatpush2.msra.mxu0 0.0
        %967 = vmatprep.subr.mxu0 0.0
        %968 = vmatpush2.msra.mxu0 0.0
        %969 = vmatprep.mubr.f32.mxu0 0.0
        %970 = vmatmul.mubr.f32.gmra.mxu0 %v900
        %v971 = vpop.f32.mrf.mxu0
        %v972 = vadd.f32 %v897, %v971
        %v973 = vpop.f32.mrf.mxu0
        %974 = vmatprep.mubr.f32.mxu0 0.0
        %975 = vmatmul.mubr.f32.gmra.mxu0 %v903
        %v976 = vpop.f32.mrf.mxu0
        %v977 = vadd.f32 %v897, %v976
        %v978 = vpop.f32.mrf.mxu0
        %979 = vdwg.mxu0
        %980 = vst.msk [vmem:[%s325] sm:$0xff] %vm499, %v972
        %981 = vst.msk [vmem:[%s325 + $0x8] sm:$0xff] %vm499, %v977
        %s982 = sand.u32 %s225, 1
        %s983 = scalar_lea.sflag [#allocation3], %s982
        %s984 = sand.u32 %s225, 1
        %s985 = smul.addr %s984, 16
        %s986 = scalar_lea.vmem [#allocation2], %s985
        // Predicated region
        $region57: #{stem_block_forward.1} parent=55 // pred_check
          %p987 = pneg %p235
        $region58: #{stem_block_forward.1} parent=55 // pred_check_branch
          %989 = sbr.rel (%p987) target = $region60
        $region59: #{stem_block_forward.1} parent=55 // pred_region
          %s991 = ssub.s32 256, 256
          %992 = vsyncadd %s983, %s991
          %s993 = smul.addr %s23, 2
          %s994 = smul.addr %s993, 128
          %s995 = scalar_lea.hbm %s9, %s994
          %s996 = sshll.u32 %s986, 4
          %s997 = int_to_ptr.vmem [resolvable:$true] %s996
          %1002 = dma.vmem_to_hbm [thread:$0]  %s997, 256, %s995, %s983, 128, 128, 8
        $region60: #{stem_block_forward.1} parent=55 // pred_fallthru
          _
      $region56: #{stem_block_forward.1} parent=5 // pred_fallthru
        _
      %p1003 = scmp.le.s32.totalorder 2, %s18
      // Predicated region
      $region61: #{stem_block_forward.1} parent=5 // pred_check
        %p1004 = pneg %p1003
      $region62: #{stem_block_forward.1} parent=5 // pred_check_branch
        %1006 = sbr.rel (%p1004) target = $region64
      $region63: #{stem_block_forward.1} parent=5 // pred_region
        %s1007 = ssub.s32 %s18, 2
        // Predicated region
        $region65: #{stem_block_forward.1} parent=63 // pred_check
          %p1008 = pneg %p241
        $region66: #{stem_block_forward.1} parent=63 // pred_check_branch
          %1010 = sbr.rel (%p1008) target = $region68
        $region67: #{stem_block_forward.1} parent=63 // pred_region
          %s1011 = sand.u32 %s226, 1
          %s1012 = scalar_lea.sflag [#allocation3], %s1011
          %s1013 = sand.u32 %s226, 1
          %s1014 = smul.addr %s1013, 16
          %s1015 = scalar_lea.vmem [#allocation2], %s1014
          %1016 = dma.done %s1012, 256
        $region68: #{stem_block_forward.1} parent=63 // pred_fallthru
          _
      $region64: #{stem_block_forward.1} parent=5 // pred_fallthru
        _
    $region6: #{stem_block_forward.1} parent=1 // loop_footer
      %s22 = sadd.s32 1, %s18
    $region7: #{stem_block_forward.1} parent=1 // loop_footer_branch
      %17 = sbr.rel target = $region3
    $region8: #{stem_block_forward.1} parent=1 // loop_exit
      _
    %1017 = vsyncpa [#allocation3], 1
    %s1018 = scalar_lea.sflag [#allocation3], 1
    %1019 = vsyncpa %s1018, 1

</llo_original>
